<compile_context>
chip_gen: v7x
topology: tpu7x:2x2x1
jax: 0.10.0
libtpu: 0.0.40
codegen_flags: <defaults>
</compile_context>

<pallas_src>
import jax
import jax.numpy as jnp
from jax.experimental import pallas as pl
from jax.experimental.pallas import tpu as pltpu

_LANE = 128   # lane width: pad last dims to multiples of this
_TM = 128     # MXU-native window-tile rows for large batches


def _round_up(n: int, m: int) -> int:
    return ((n + m - 1) // m) * m


def _pick_tile_rows(n: int) -> int:
    """Row-tile for the window axis: 128 for big batches, 8-aligned for tiny."""
    if n >= _TM:
        return _TM
    return max(8, _round_up(n, 8))


def _pad2d(a, rows: int, cols: int):
    r, c = a.shape
    if r == rows and c == cols:
        return a
    return jnp.pad(a, ((0, rows - r), (0, cols - c)))


# ---------------------------------------------------------------------------
# Pallas kernel: fused  tanh(x @ W1 + b1) @ W2 + b2  on one (TM, F) window tile
# ---------------------------------------------------------------------------
def _tta_model_kernel(x_ref, w1_ref, b1_ref, w2_ref, b2_ref, o_ref):
    # (TM, Fp) @ (Fp, Hp) -> (TM, Hp) on the MXU, f32 accumulation
    h = jnp.dot(x_ref[...], w1_ref[...], preferred_element_type=jnp.float32)
    h = jnp.tanh(h + b1_ref[...])                       # EUP tanh, f32
    # (TM, Hp) @ (Hp, Kp) -> (TM, Kp)
    y = jnp.dot(h, w2_ref[...], preferred_element_type=jnp.float32)
    o_ref[...] = (y + b2_ref[...]).astype(o_ref.dtype)  # lane-dense store


@jax.jit
def _model_forward_pallas(x_flat, w1, b1, w2, b2):
    """Batched model forward for x_flat of shape (N, F) via one pallas_call."""
    n, f = x_flat.shape
    h = w1.shape[1]
    k = w2.shape[1]

    fp = _round_up(f, _LANE)
    hp = _round_up(h, _LANE)
    kp = _round_up(k, _LANE)
    tm = _pick_tile_rows(n)
    n_pad = _round_up(n, tm)

    # Zero-pad everything lane/sublane-dense; padded lanes contribute exactly 0
    # (tanh(0 + 0) = 0 and padded W2 rows/cols are zero).
    x_p = _pad2d(x_flat.astype(jnp.float32), n_pad, fp)
    w1_p = _pad2d(w1.astype(jnp.float32), fp, hp)
    b1_p = _pad2d(b1.astype(jnp.float32).reshape(1, -1), 1, hp)
    w2_p = _pad2d(w2.astype(jnp.float32), hp, kp)
    b2_p = _pad2d(b2.astype(jnp.float32).reshape(1, -1), 1, kp)

    grid = (n_pad // tm,)

    out_p = pl.pallas_call(
        _tta_model_kernel,
        out_shape=jax.ShapeDtypeStruct((n_pad, kp), jnp.float32),
        grid_spec=pltpu.PrefetchScalarGridSpec(
            num_scalar_prefetch=0,
            grid=grid,
            in_specs=[
                # x: a new (tm, Fp) window tile per grid step
                pl.BlockSpec((tm, fp), lambda i: (i, 0)),
                # weights / biases: same block every step -> VMEM-resident
                pl.BlockSpec((fp, hp), lambda i: (0, 0)),
                pl.BlockSpec((1, hp), lambda i: (0, 0)),
                pl.BlockSpec((hp, kp), lambda i: (0, 0)),
                pl.BlockSpec((1, kp), lambda i: (0, 0)),
            ],
            out_specs=pl.BlockSpec((tm, kp), lambda i: (i, 0)),
        ),
        compiler_params=pltpu.CompilerParams(
            # windows are independent -> shard across TCs on v7x
            dimension_semantics=("parallel",)),
    )(x_p, w1_p, b1_p, w2_p, b2_p)

    # Slice padded rows / padded class lanes back out.
    return out_p[:n, :k]


# ---------------------------------------------------------------------------
# JAX-side TTAMethod wrapper (mirrors the PyTorch class structure)
# ---------------------------------------------------------------------------
class TTAMethod:
    def __init__(self, params: dict, config: dict):
        self.params = params      # the wrapped "model" (synthetic weights)
        self.config = config
        self.configure_model()

    def configure_model(self):
        # TODO(synk): abstract in the reference (subclass-specific freezing of
        # BN / affine params); nothing to configure for the synthetic model.
        pass

    def forward(self, x):
        assert x.shape[0] == 1
        outputs = self.forward_and_adapt(x)
        return outputs

    def forward_and_adapt(self, x):
        # TODO(synk): gradient-based test-time adaptation is abstract in the
        # base class; the only concrete compute path is the model forward.
        return self.forward_sliding_window(x)

    def forward_sliding_window(self, x):
        # x: (N, C, T) NCT -> flatten row-major -> (N, C*T), N windows batched
        # through one Pallas launch (weights stay VMEM-resident across tiles).
        n = x.shape[0]
        x_flat = x.reshape(n, -1).astype(jnp.float32)
        return _model_forward_pallas(
            x_flat,
            self.params["w1"], self.params["b1"],
            self.params["w2"], self.params["b2"],
        )

    def collect_params(self):
        # Mirrors the PyTorch helper: gather weight/bias tensors + names.
        params, names = [], []
        for nm in ("layer1", "layer2"):
            idx = "1" if nm == "layer1" else "2"
            params.append(self.params[f"w{idx}"]); names.append(f"{nm}.weight")
            params.append(self.params[f"b{idx}"]); names.append(f"{nm}.bias")
        return params, names

    __call__ = forward


# ---------------------------------------------------------------------------
# Deterministic parameter init + example run
# ---------------------------------------------------------------------------
def make_params(key, in_features, hidden, num_classes):
    k1, k2, k3, k4 = jax.random.split(key, 4)
    scale1 = 1.0 / jnp.sqrt(in_features)
    scale2 = 1.0 / jnp.sqrt(hidden)
    return {
        "w1": jax.random.normal(k1, (in_features, hidden), jnp.float32) * scale1,
        "b1": jax.random.normal(k2, (1, hidden), jnp.float32) * scale1,
        "w2": jax.random.normal(k3, (hidden, num_classes), jnp.float32) * scale2,
        "b2": jax.random.normal(k4, (1, num_classes), jnp.float32) * scale2,
    }


if __name__ == "__main__":
    key = jax.random.PRNGKey(0)
    k_x, k_w, k_p = jax.random.split(key, 3)

    # Small EEG-like shapes: C=8 channels, T=16 samples -> F = 128 features.
    C, T = 8, 16
    HIDDEN, NUM_CLASSES = 32, 4
    N_WINDOWS = 256   # sliding windows batched through a 2-step grid

    params = make_params(k_p, C * T, HIDDEN, NUM_CLASSES)
    tta = TTAMethod(params, config={})

    # (a) Base-class forward path: batch must be 1 (padded only to 8 rows now).
    x1 = jax.random.normal(k_x, (1, C, T), jnp.float32)
    out1 = jax.block_until_ready(tta(x1))

    # (b) Sliding-window path: many windows in one pallas_call.
    xw = jax.random.normal(k_w, (N_WINDOWS, C, T), jnp.float32)
    outw = jax.block_until_ready(tta.forward_sliding_window(xw))

    # Pure-JAX reference check of the fused kernel.
    def ref_fwd(x):
        xf = x.reshape(x.shape[0], -1)
        return jnp.tanh(xf @ params["w1"] + params["b1"]) @ params["w2"] + params["b2"]

    assert out1.shape == (1, NUM_CLASSES)
    assert outw.shape == (N_WINDOWS, NUM_CLASSES)
    assert jnp.allclose(out1, ref_fwd(x1), atol=1e-4, rtol=1e-4)
    assert jnp.allclose(outw, ref_fwd(xw), atol=1e-4, rtol=1e-4)

    print("KERNEL_OK")
</pallas_src>

<mosaic_0001>
module attributes {stable_mosaic.version = 11 : i64} {
  func.func @_tta_model_kernel(%arg0: i32, %arg1: memref<8x128xf32, #tpu.memory_space<vmem>>, %arg2: memref<128x128xf32, #tpu.memory_space<vmem>>, %arg3: memref<1x128xf32, #tpu.memory_space<vmem>>, %arg4: memref<128x128xf32, #tpu.memory_space<vmem>>, %arg5: memref<1x128xf32, #tpu.memory_space<vmem>>, %arg6: memref<8x128xf32, #tpu.memory_space<vmem>>) attributes {dimension_semantics = [#tpu.dimension_semantics<parallel>], iteration_bounds = array<i64: 1>, scalar_prefetch = 0 : i64, scratch_operands = 0 : i64, tpu.core_type = #tpu.core_type<tc>, window_params = [{transform_indices = @transform_0, window_bounds = array<i64: 8, 128>}, {pipeline_mode = #tpu.pipeline_mode<synchronous>, transform_indices = @transform_1, window_bounds = array<i64: 128, 128>}, {pipeline_mode = #tpu.pipeline_mode<synchronous>, transform_indices = @transform_2, window_bounds = array<i64: 1, 128>}, {pipeline_mode = #tpu.pipeline_mode<synchronous>, transform_indices = @transform_3, window_bounds = array<i64: 128, 128>}, {pipeline_mode = #tpu.pipeline_mode<synchronous>, transform_indices = @transform_4, window_bounds = array<i64: 1, 128>}, {transform_indices = @transform_5, window_bounds = array<i64: 8, 128>}]} {
    %c0 = arith.constant 0 : index
    %c0_0 = arith.constant 0 : index
    %0 = vector.load %arg1[%c0, %c0_0] : memref<8x128xf32, #tpu.memory_space<vmem>>, vector<8x128xf32>
    %c0_1 = arith.constant 0 : index
    %c0_2 = arith.constant 0 : index
    %1 = vector.load %arg2[%c0_1, %c0_2] : memref<128x128xf32, #tpu.memory_space<vmem>>, vector<128x128xf32>
    %cst = arith.constant dense<0.000000e+00> : vector<8x128xf32>
    %2 = tpu.matmul %0, %1, %cst {dimension_numbers = #tpu.dot_dimension_numbers<[1], [0], [0], [1], [0, 0, 1, 1], [], []>} : vector<8x128xf32>, vector<128x128xf32>, vector<8x128xf32> -> vector<8x128xf32>
    %c0_3 = arith.constant 0 : index
    %c0_4 = arith.constant 0 : index
    %3 = vector.load %arg3[%c0_3, %c0_4] : memref<1x128xf32, #tpu.memory_space<vmem>>, vector<1x128xf32>
    %4 = vector.broadcast %3 : vector<1x128xf32> to vector<8x128xf32>
    %5 = arith.addf %2, %4 : vector<8x128xf32>
    %6 = math.tanh %5 : vector<8x128xf32>
    %c0_5 = arith.constant 0 : index
    %c0_6 = arith.constant 0 : index
    %7 = vector.load %arg4[%c0_5, %c0_6] : memref<128x128xf32, #tpu.memory_space<vmem>>, vector<128x128xf32>
    %cst_7 = arith.constant dense<0.000000e+00> : vector<8x128xf32>
    %8 = tpu.matmul %6, %7, %cst_7 {dimension_numbers = #tpu.dot_dimension_numbers<[1], [0], [0], [1], [0, 0, 1, 1], [], []>} : vector<8x128xf32>, vector<128x128xf32>, vector<8x128xf32> -> vector<8x128xf32>
    %c0_8 = arith.constant 0 : index
    %c0_9 = arith.constant 0 : index
    %9 = vector.load %arg5[%c0_8, %c0_9] : memref<1x128xf32, #tpu.memory_space<vmem>>, vector<1x128xf32>
    %10 = vector.broadcast %9 : vector<1x128xf32> to vector<8x128xf32>
    %11 = arith.addf %8, %10 : vector<8x128xf32>
    %c0_10 = arith.constant 0 : index
    %c0_11 = arith.constant 0 : index
    %12 = vector.load %arg6[%c0_10, %c0_11] : memref<8x128xf32, #tpu.memory_space<vmem>>, vector<8x128xf32>
    tpu.vector_store %arg6[%c0_10, %c0_11], %11 {strides = array<i32>} : memref<8x128xf32, #tpu.memory_space<vmem>>, vector<8x128xf32>,
    return
  }
  func.func @transform_0(%arg0: i32) -> (i32, i32) {
    %c0_i32 = arith.constant 0 : i32
    %c0_i32_0 = arith.constant 0 : i32
    return %arg0, %c0_i32 : i32, i32
  }
  func.func @transform_1(%arg0: i32) -> (i32, i32) {
    %c0_i32 = arith.constant 0 : i32
    %c0_i32_0 = arith.constant 0 : i32
    %c0_i32_1 = arith.constant 0 : i32
    return %c0_i32, %c0_i32_0 : i32, i32
  }
  func.func @transform_2(%arg0: i32) -> (i32, i32) {
    %c0_i32 = arith.constant 0 : i32
    %c0_i32_0 = arith.constant 0 : i32
    %c0_i32_1 = arith.constant 0 : i32
    return %c0_i32, %c0_i32_0 : i32, i32
  }
  func.func @transform_3(%arg0: i32) -> (i32, i32) {
    %c0_i32 = arith.constant 0 : i32
    %c0_i32_0 = arith.constant 0 : i32
    %c0_i32_1 = arith.constant 0 : i32
    return %c0_i32, %c0_i32_0 : i32, i32
  }
  func.func @transform_4(%arg0: i32) -> (i32, i32) {
    %c0_i32 = arith.constant 0 : i32
    %c0_i32_0 = arith.constant 0 : i32
    %c0_i32_1 = arith.constant 0 : i32
    return %c0_i32, %c0_i32_0 : i32, i32
  }
  func.func @transform_5(%arg0: i32) -> (i32, i32) {
    %c0_i32 = arith.constant 0 : i32
    %c0_i32_0 = arith.constant 0 : i32
    return %arg0, %c0_i32 : i32, i32
  }
}

</mosaic_0001>

<llo_original>
// kernel: _model_forward_pallas.1
$region0: #{_model_forward_pallas.1}
  #allocation0 [shape = 'u32[]', space=smem, size = 0x4, offset = 0x4, fixed_abs, tag = 'smem constant byte address 0x4 - core index']
  #allocation1 [shape = 'u32[144,128]{1,0:T(1,128)}', space=vmem, size = 0x12000, scoped, tag = 'internal scratch']
  %s0 = inlined_call_operand.vmem [shape: f32[8,128], index: 0, kind: input, shape index: {}]
  %s1 = inlined_call_operand.vmem [shape: f32[128,128], index: 1, kind: input, shape index: {}]
  %s2 = inlined_call_operand.vmem [shape: f32[1,128], index: 2, kind: input, shape index: {}]
  %s3 = inlined_call_operand.vmem [shape: f32[128,128], index: 3, kind: input, shape index: {}]
  %s4 = inlined_call_operand.vmem [shape: f32[1,128], index: 4, kind: input, shape index: {}]
  %s5 = inlined_call_operand.vmem [shape: f32[8,128], index: 5, kind: output, shape index: {}]
  %s6 = sld [smem:[#allocation0]]
  $region30: #{_model_forward_pallas.1} parent=0
    _
  %s8 = ssub.s32 1, %s6
  %s9 = scalar_select 0, %s8, %s6
  // Predicated region
  $region2: #{_model_forward_pallas.1} parent=0 // pred_check
    _
  $region3: #{_model_forward_pallas.1} parent=0 // pred_check_branch
    %11 = sbr.rel (0) target = $region5
  $region4: #{_model_forward_pallas.1} parent=0 // pred_region
    _
  $region5: #{_model_forward_pallas.1} parent=0 // pred_fallthru
    _
  // Predicated region
  $region6: #{_model_forward_pallas.1} parent=0 // pred_check
    _
  $region7: #{_model_forward_pallas.1} parent=0 // pred_check_branch
    %13 = sbr.rel (0) target = $region9
  $region8: #{_model_forward_pallas.1} parent=0 // pred_region
    _
  $region9: #{_model_forward_pallas.1} parent=0 // pred_fallthru
    _
  // Predicated region
  $region10: #{_model_forward_pallas.1} parent=0 // pred_check
    _
  $region11: #{_model_forward_pallas.1} parent=0 // pred_check_branch
    %15 = sbr.rel (0) target = $region13
  $region12: #{_model_forward_pallas.1} parent=0 // pred_region
    _
  $region13: #{_model_forward_pallas.1} parent=0 // pred_fallthru
    _
  // Predicated region
  $region14: #{_model_forward_pallas.1} parent=0 // pred_check
    _
  $region15: #{_model_forward_pallas.1} parent=0 // pred_check_branch
    %17 = sbr.rel (0) target = $region17
  $region16: #{_model_forward_pallas.1} parent=0 // pred_region
    _
  $region17: #{_model_forward_pallas.1} parent=0 // pred_fallthru
    _
  // Predicated region
  $region18: #{_model_forward_pallas.1} parent=0 // pred_check
    _
  $region19: #{_model_forward_pallas.1} parent=0 // pred_check_branch
    %19 = sbr.rel (0) target = $region21
  $region20: #{_model_forward_pallas.1} parent=0 // pred_region
    _
  $region21: #{_model_forward_pallas.1} parent=0 // pred_fallthru
    _
  %v20 = vld [vmem:[%s0] sm:$0xff]
  %v21 = vld [vmem:[%s1] sm:$0xff]
  %v22 = vld [vmem:[%s1 + $0x8] sm:$0xff]
  %v23 = vld [vmem:[%s1 + $0x10] sm:$0xff]
  %v24 = vld [vmem:[%s1 + $0x18] sm:$0xff]
  %v25 = vld [vmem:[%s1 + $0x20] sm:$0xff]
  %v26 = vld [vmem:[%s1 + $0x28] sm:$0xff]
  %v27 = vld [vmem:[%s1 + $0x30] sm:$0xff]
  %v28 = vld [vmem:[%s1 + $0x38] sm:$0xff]
  %v29 = vld [vmem:[%s1 + $0x40] sm:$0xff]
  %v30 = vld [vmem:[%s1 + $0x48] sm:$0xff]
  %v31 = vld [vmem:[%s1 + $0x50] sm:$0xff]
  %v32 = vld [vmem:[%s1 + $0x58] sm:$0xff]
  %v33 = vld [vmem:[%s1 + $0x60] sm:$0xff]
  %v34 = vld [vmem:[%s1 + $0x68] sm:$0xff]
  %v35 = vld [vmem:[%s1 + $0x70] sm:$0xff]
  %v36 = vld [vmem:[%s1 + $0x78] sm:$0xff]
  %v37 = vld [vmem:[%s2] sm:$0x1]
  %v39 = vlaneseq
  %v40 = vshrl.u32 %v39, 7
  %v41 = vsub.s32 0, %v40
  %v42 = vrot.slane %v37, %v41
  %44 = vmatprep.subr.mxu0 0.0
  %45 = vmatpush1.msra.mxu0 %v21
  %46 = vmatprep.subr.mxu0 0.0
  %47 = vmatpush1.msra.mxu0 %v22
  %48 = vmatprep.subr.mxu0 0.0
  %49 = vmatpush1.msra.mxu0 %v23
  %50 = vmatprep.subr.mxu0 0.0
  %51 = vmatpush1.msra.mxu0 %v24
  %52 = vmatprep.subr.mxu0 0.0
  %53 = vmatpush1.msra.mxu0 %v25
  %54 = vmatprep.subr.mxu0 0.0
  %55 = vmatpush1.msra.mxu0 %v26
  %56 = vmatprep.subr.mxu0 0.0
  %57 = vmatpush1.msra.mxu0 %v27
  %58 = vmatprep.subr.mxu0 0.0
  %59 = vmatpush1.msra.mxu0 %v28
  %60 = vmatprep.subr.mxu0 0.0
  %61 = vmatpush1.msra.mxu0 %v29
  %62 = vmatprep.subr.mxu0 0.0
  %63 = vmatpush1.msra.mxu0 %v30
  %64 = vmatprep.subr.mxu0 0.0
  %65 = vmatpush1.msra.mxu0 %v31
  %66 = vmatprep.subr.mxu0 0.0
  %67 = vmatpush1.msra.mxu0 %v32
  %68 = vmatprep.subr.mxu0 0.0
  %69 = vmatpush1.msra.mxu0 %v33
  %70 = vmatprep.subr.mxu0 0.0
  %71 = vmatpush1.msra.mxu0 %v34
  %72 = vmatprep.subr.mxu0 0.0
  %73 = vmatpush1.msra.mxu0 %v35
  %74 = vmatprep.subr.mxu0 0.0
  %75 = vmatpush1.msra.mxu0 %v36
  %76 = vmatprep.subr.mxu0 0.0
  %77 = vmatpush1.msra.mxu0 0.0
  %78 = vmatprep.subr.mxu0 0.0
  %79 = vmatpush1.msra.mxu0 0.0
  %80 = vmatprep.subr.mxu0 0.0
  %81 = vmatpush1.msra.mxu0 0.0
  %82 = vmatprep.subr.mxu0 0.0
  %83 = vmatpush1.msra.mxu0 0.0
  %84 = vmatprep.subr.mxu0 0.0
  %85 = vmatpush1.msra.mxu0 0.0
  %86 = vmatprep.subr.mxu0 0.0
  %87 = vmatpush1.msra.mxu0 0.0
  %88 = vmatprep.subr.mxu0 0.0
  %89 = vmatpush1.msra.mxu0 0.0
  %90 = vmatprep.subr.mxu0 0.0
  %91 = vmatpush1.msra.mxu0 0.0
  %92 = vmatprep.subr.mxu0 0.0
  %93 = vmatpush1.msra.mxu0 0.0
  %94 = vmatprep.subr.mxu0 0.0
  %95 = vmatpush1.msra.mxu0 0.0
  %96 = vmatprep.subr.mxu0 0.0
  %97 = vmatpush1.msra.mxu0 0.0
  %98 = vmatprep.subr.mxu0 0.0
  %99 = vmatpush1.msra.mxu0 0.0
  %100 = vmatprep.subr.mxu0 0.0
  %101 = vmatpush1.msra.mxu0 0.0
  %102 = vmatprep.subr.mxu0 0.0
  %103 = vmatpush1.msra.mxu0 0.0
  %104 = vmatprep.subr.mxu0 0.0
  %105 = vmatpush1.msra.mxu0 0.0
  %106 = vmatprep.subr.mxu0 0.0
  %107 = vmatpush1.msra.mxu0 0.0
  %108 = vmatprep.mubr.f32.mxu0 0.0
  %109 = vmatmul.mubr.f32.gmra.mrb[0].mxu0 %v20
  %v110 = vpop.f32.mrb[0].mxu0
  %v111 = vadd.f32 %v42, %v110
  %v112 = vpop.f32.mrb[0].mxu0
  %113 = vdwg.mxu0
  %v114 = vtanh.pop %v111
  %v115 = vld [vmem:[%s3] sm:$0xff]
  %v116 = vld [vmem:[%s3 + $0x8] sm:$0xff]
  %v117 = vld [vmem:[%s3 + $0x10] sm:$0xff]
  %v118 = vld [vmem:[%s3 + $0x18] sm:$0xff]
  %v119 = vld [vmem:[%s3 + $0x20] sm:$0xff]
  %v120 = vld [vmem:[%s3 + $0x28] sm:$0xff]
  %v121 = vld [vmem:[%s3 + $0x30] sm:$0xff]
  %v122 = vld [vmem:[%s3 + $0x38] sm:$0xff]
  %v123 = vld [vmem:[%s3 + $0x40] sm:$0xff]
  %v124 = vld [vmem:[%s3 + $0x48] sm:$0xff]
  %v125 = vld [vmem:[%s3 + $0x50] sm:$0xff]
  %v126 = vld [vmem:[%s3 + $0x58] sm:$0xff]
  %v127 = vld [vmem:[%s3 + $0x60] sm:$0xff]
  %v128 = vld [vmem:[%s3 + $0x68] sm:$0xff]
  %v129 = vld [vmem:[%s3 + $0x70] sm:$0xff]
  %v130 = vld [vmem:[%s3 + $0x78] sm:$0xff]
  %v131 = vld [vmem:[%s4] sm:$0x1]
  %v133 = vlaneseq
  %v134 = vshrl.u32 %v133, 7
  %v135 = vsub.s32 0, %v134
  %v136 = vrot.slane %v131, %v135
  %138 = vmatprep.subr.mxu0 0.0
  %139 = vmatpush1.msra.mxu0 %v115
  %140 = vmatprep.subr.mxu0 0.0
  %141 = vmatpush1.msra.mxu0 %v116
  %142 = vmatprep.subr.mxu0 0.0
  %143 = vmatpush1.msra.mxu0 %v117
  %144 = vmatprep.subr.mxu0 0.0
  %145 = vmatpush1.msra.mxu0 %v118
  %146 = vmatprep.subr.mxu0 0.0
  %147 = vmatpush1.msra.mxu0 %v119
  %148 = vmatprep.subr.mxu0 0.0
  %149 = vmatpush1.msra.mxu0 %v120
  %150 = vmatprep.subr.mxu0 0.0
  %151 = vmatpush1.msra.mxu0 %v121
  %152 = vmatprep.subr.mxu0 0.0
  %153 = vmatpush1.msra.mxu0 %v122
  %154 = vmatprep.subr.mxu0 0.0
  %155 = vmatpush1.msra.mxu0 %v123
  %156 = vmatprep.subr.mxu0 0.0
  %157 = vmatpush1.msra.mxu0 %v124
  %158 = vmatprep.subr.mxu0 0.0
  %159 = vmatpush1.msra.mxu0 %v125
  %160 = vmatprep.subr.mxu0 0.0
  %161 = vmatpush1.msra.mxu0 %v126
  %162 = vmatprep.subr.mxu0 0.0
  %163 = vmatpush1.msra.mxu0 %v127
  %164 = vmatprep.subr.mxu0 0.0
  %165 = vmatpush1.msra.mxu0 %v128
  %166 = vmatprep.subr.mxu0 0.0
  %167 = vmatpush1.msra.mxu0 %v129
  %168 = vmatprep.subr.mxu0 0.0
  %169 = vmatpush1.msra.mxu0 %v130
  %170 = vmatprep.subr.mxu0 0.0
  %171 = vmatpush1.msra.mxu0 0.0
  %172 = vmatprep.subr.mxu0 0.0
  %173 = vmatpush1.msra.mxu0 0.0
  %174 = vmatprep.subr.mxu0 0.0
  %175 = vmatpush1.msra.mxu0 0.0
  %176 = vmatprep.subr.mxu0 0.0
  %177 = vmatpush1.msra.mxu0 0.0
  %178 = vmatprep.subr.mxu0 0.0
  %179 = vmatpush1.msra.mxu0 0.0
  %180 = vmatprep.subr.mxu0 0.0
  %181 = vmatpush1.msra.mxu0 0.0
  %182 = vmatprep.subr.mxu0 0.0
  %183 = vmatpush1.msra.mxu0 0.0
  %184 = vmatprep.subr.mxu0 0.0
  %185 = vmatpush1.msra.mxu0 0.0
  %186 = vmatprep.subr.mxu0 0.0
  %187 = vmatpush1.msra.mxu0 0.0
  %188 = vmatprep.subr.mxu0 0.0
  %189 = vmatpush1.msra.mxu0 0.0
  %190 = vmatprep.subr.mxu0 0.0
  %191 = vmatpush1.msra.mxu0 0.0
  %192 = vmatprep.subr.mxu0 0.0
  %193 = vmatpush1.msra.mxu0 0.0
  %194 = vmatprep.subr.mxu0 0.0
  %195 = vmatpush1.msra.mxu0 0.0
  %196 = vmatprep.subr.mxu0 0.0
  %197 = vmatpush1.msra.mxu0 0.0
  %198 = vmatprep.subr.mxu0 0.0
  %199 = vmatpush1.msra.mxu0 0.0
  %200 = vmatprep.subr.mxu0 0.0
  %201 = vmatpush1.msra.mxu0 0.0
  %202 = vmatprep.mubr.f32.mxu0 0.0
  %203 = vmatmul.mubr.f32.gmra.mrb[0].mxu0 %v114
  %v204 = vpop.f32.mrb[0].mxu0
  %v205 = vadd.f32 %v136, %v204
  %v206 = vpop.f32.mrb[0].mxu0
  %207 = vdwg.mxu0
  %208 = vst [vmem:[%s5] sm:$0xff] %v205
  // Predicated region
  $region22: #{_model_forward_pallas.1} parent=0 // pred_check
    _
  $region23: #{_model_forward_pallas.1} parent=0 // pred_check_branch
    %210 = sbr.rel (0) target = $region25
  $region24: #{_model_forward_pallas.1} parent=0 // pred_region
    _
  $region25: #{_model_forward_pallas.1} parent=0 // pred_fallthru
    _
  // Predicated region
  $region26: #{_model_forward_pallas.1} parent=0 // pred_check
    _
  $region27: #{_model_forward_pallas.1} parent=0 // pred_check_branch
    %212 = sbr.rel (0) target = $region29
  $region28: #{_model_forward_pallas.1} parent=0 // pred_region
    _
  $region29: #{_model_forward_pallas.1} parent=0 // pred_fallthru
    _

</llo_original>
